<compile_context>
chip_gen: v5e
topology: v5e:2x2
jax: 0.10.0
libtpu: 0.0.40
codegen_flags: <defaults>
</compile_context>

<pallas_src>
import jax
import jax.numpy as jnp
from jax import lax
from jax.experimental import pallas as pl
from jax.experimental.pallas import tpu as pltpu


def attention_kernel(q_ref, ctx_ref, w_in_t_ref, w_out_mix_t_ref, w_out_q_t_ref,
                     out_ref, attn_ref):
    q = q_ref[...]            # (Lq, D)  input dtype
    ctx = ctx_ref[...]        # (Lk, D)  input dtype
    in_dtype = ctx_ref.dtype
    w_dtype = w_out_mix_t_ref.dtype

    # linear_in (no bias): q' = q @ W_in^T, f32 accumulation on the MXU.
    qp = jnp.dot(q, w_in_t_ref[...],
                 preferred_element_type=jnp.float32)                      # (Lq, D) f32

    # scores = q' @ ctx^T : last-vs-last contraction -> no transpose of ctx.
    # MXU operands stay in the input dtype (bf16-native when inputs are bf16).
    scores = lax.dot_general(
        qp.astype(in_dtype), ctx,
        dimension_numbers=(((1,), (1,)), ((), ())),
        preferred_element_type=jnp.float32)                               # (Lq, Lk) f32

    # Numerically-stable, *exact* softmax (rows of the returned weights sum to 1).
    m = jnp.max(scores, axis=-1, keepdims=True)
    e = jnp.exp(scores - m)
    weights = e / jnp.sum(e, axis=-1, keepdims=True)                      # (Lq, Lk) f32

    # mix = weights @ ctx  (cast the small weights operand down, not ctx up).
    mix = jnp.dot(weights.astype(in_dtype), ctx,
                  preferred_element_type=jnp.float32)                     # (Lq, D) f32

    # output = tanh(linear_out(concat([mix, q'], -1)))
    #        = tanh(mix @ W_out[:, :D]^T + q' @ W_out[:, D:]^T)
    out = jnp.tanh(
        jnp.dot(mix.astype(w_dtype), w_out_mix_t_ref[...],
                preferred_element_type=jnp.float32)
        + jnp.dot(qp.astype(w_dtype), w_out_q_t_ref[...],
                  preferred_element_type=jnp.float32))                    # (Lq, D) f32

    out_ref[...] = out.astype(out_ref.dtype)
    attn_ref[...] = weights.astype(attn_ref.dtype)


def attention_pallas(query, context, w_in, w_out):
    """query: [B, Lq, D], context: [B, Lk, D], w_in: [D, D], w_out: [D, 2D]."""
    B, Lq, D = query.shape
    Lk = context.shape[1]

    # Pre-transpose / split weights once on the host (free XLA ops at the call
    # boundary, no per-grid-step XLU transpose inside the kernel).
    w_in_t = jnp.transpose(w_in)                 # (D, D)   multiplies raw query
    w_out_mix_t = jnp.transpose(w_out[:, :D])    # (D, D)   multiplies `mix`
    w_out_q_t = jnp.transpose(w_out[:, D:])      # (D, D)   multiplies q'

    grid_spec = pltpu.PrefetchScalarGridSpec(
        num_scalar_prefetch=0,
        grid=(B,),                               # one batch element per step
        in_specs=[
            pl.BlockSpec((None, Lq, D), lambda b: (b, 0, 0)),   # query  -> (Lq, D)
            pl.BlockSpec((None, Lk, D), lambda b: (b, 0, 0)),   # context-> (Lk, D)
            pl.BlockSpec((D, D), lambda b: (0, 0)),             # W_in^T (resident)
            pl.BlockSpec((D, D), lambda b: (0, 0)),             # W_out[:, :D]^T
            pl.BlockSpec((D, D), lambda b: (0, 0)),             # W_out[:, D:]^T
        ],
        out_specs=[
            pl.BlockSpec((None, Lq, D), lambda b: (b, 0, 0)),
            pl.BlockSpec((None, Lq, Lk), lambda b: (b, 0, 0)),
        ],
    )

    out, attn = pl.pallas_call(
        attention_kernel,
        out_shape=(
            jax.ShapeDtypeStruct((B, Lq, D), query.dtype),
            jax.ShapeDtypeStruct((B, Lq, Lk), query.dtype),
        ),
        grid_spec=grid_spec,
        compiler_params=pltpu.CompilerParams(
            dimension_semantics=("parallel",)),  # shard batch across TCs (v7x)
    )(query, context, w_in_t, w_out_mix_t, w_out_q_t)
    return out, attn


def attention_ref(query, context, w_in, w_out):
    """Pure-JAX reference matching the PyTorch forward exactly."""
    q = jnp.einsum("bld,ed->ble", query, w_in)                 # linear_in
    scores = jnp.einsum("bld,bkd->blk", q, context)            # bmm
    weights = jax.nn.softmax(scores, axis=-1)
    mix = jnp.einsum("blk,bkd->bld", weights, context)         # bmm
    combined = jnp.concatenate([mix, q], axis=-1)
    out = jnp.tanh(jnp.einsum("blc,dc->bld", combined, w_out))  # linear_out
    return out, weights


if __name__ == "__main__":
    B, Lq, Lk, D = 2, 8, 16, 32

    key = jax.random.PRNGKey(0)
    k_q, k_c, k_win, k_wout = jax.random.split(key, 4)
    query = jax.random.normal(k_q, (B, Lq, D), dtype=jnp.float32)
    context = jax.random.normal(k_c, (B, Lk, D), dtype=jnp.float32)
    # Deterministic nn.Linear-like init (scale 1/sqrt(fan_in), no bias).
    w_in = jax.random.uniform(k_win, (D, D), jnp.float32,
                              minval=-1.0, maxval=1.0) / jnp.sqrt(D)
    w_out = jax.random.uniform(k_wout, (D, 2 * D), jnp.float32,
                               minval=-1.0, maxval=1.0) / jnp.sqrt(2 * D)

    out, attn = attention_pallas(query, context, w_in, w_out)
    out = jax.block_until_ready(out)
    attn = jax.block_until_ready(attn)

    out_r, attn_r = attention_ref(query, context, w_in, w_out)
    assert jnp.allclose(out, out_r, atol=2e-3, rtol=2e-3)
    assert jnp.allclose(attn, attn_r, atol=2e-3, rtol=2e-3)
    # Exact softmax: returned attention weights sum to 1 per row.
    assert jnp.allclose(jnp.sum(attn, axis=-1), 1.0, atol=1e-5)

    print("KERNEL_OK")
</pallas_src>

<mosaic_0001>
module attributes {stable_mosaic.version = 11 : i64} {
  func.func @attention_kernel(%arg0: i32, %arg1: memref<1x8x32xf32, #tpu.memory_space<vmem>>, %arg2: memref<1x16x32xf32, #tpu.memory_space<vmem>>, %arg3: memref<32x32xf32, #tpu.memory_space<vmem>>, %arg4: memref<32x32xf32, #tpu.memory_space<vmem>>, %arg5: memref<32x32xf32, #tpu.memory_space<vmem>>, %arg6: memref<1x8x32xf32, #tpu.memory_space<vmem>>, %arg7: memref<1x8x16xf32, #tpu.memory_space<vmem>>) attributes {dimension_semantics = [#tpu.dimension_semantics<parallel>], iteration_bounds = array<i64: 2>, scalar_prefetch = 0 : i64, scratch_operands = 0 : i64, tpu.core_type = #tpu.core_type<tc>, window_params = [{transform_indices = @transform_0, window_bounds = array<i64: 1, 8, 32>}, {transform_indices = @transform_1, window_bounds = array<i64: 1, 16, 32>}, {pipeline_mode = #tpu.pipeline_mode<synchronous>, transform_indices = @transform_2, window_bounds = array<i64: 32, 32>}, {pipeline_mode = #tpu.pipeline_mode<synchronous>, transform_indices = @transform_3, window_bounds = array<i64: 32, 32>}, {pipeline_mode = #tpu.pipeline_mode<synchronous>, transform_indices = @transform_4, window_bounds = array<i64: 32, 32>}, {transform_indices = @transform_5, window_bounds = array<i64: 1, 8, 32>}, {transform_indices = @transform_6, window_bounds = array<i64: 1, 8, 16>}]} {
    %c0 = arith.constant 0 : index
    %c0_0 = arith.constant 0 : index
    %c0_1 = arith.constant 0 : index
    %0 = vector.load %arg1[%c0, %c0_0, %c0_1] : memref<1x8x32xf32, #tpu.memory_space<vmem>>, vector<1x8x32xf32>
    %1 = vector.shape_cast %0 : vector<1x8x32xf32> to vector<8x32xf32>
    %c0_2 = arith.constant 0 : index
    %c0_3 = arith.constant 0 : index
    %c0_4 = arith.constant 0 : index
    %2 = vector.load %arg2[%c0_2, %c0_3, %c0_4] : memref<1x16x32xf32, #tpu.memory_space<vmem>>, vector<1x16x32xf32>
    %3 = vector.shape_cast %2 : vector<1x16x32xf32> to vector<16x32xf32>
    %c0_5 = arith.constant 0 : index
    %c0_6 = arith.constant 0 : index
    %4 = vector.load %arg3[%c0_5, %c0_6] : memref<32x32xf32, #tpu.memory_space<vmem>>, vector<32x32xf32>
    %cst = arith.constant dense<0.000000e+00> : vector<8x32xf32>
    %5 = tpu.matmul %1, %4, %cst {dimension_numbers = #tpu.dot_dimension_numbers<[1], [0], [0], [1], [0, 0, 1, 1], [], []>} : vector<8x32xf32>, vector<32x32xf32>, vector<8x32xf32> -> vector<8x32xf32>
    %cst_7 = arith.constant dense<0.000000e+00> : vector<8x16xf32>
    %6 = tpu.matmul %5, %3, %cst_7 {dimension_numbers = #tpu.dot_dimension_numbers<[1], [1], [0], [0], [0, 0, 1, 0], [], []>} : vector<8x32xf32>, vector<16x32xf32>, vector<8x16xf32> -> vector<8x16xf32>
    %cst_8 = arith.constant dense<0xFF800000> : vector<8xf32>
    %7 = vector.multi_reduction <maximumf>, %6, %cst_8 [1] : vector<8x16xf32> to vector<8xf32>
    %8 = vector.shape_cast %7 : vector<8xf32> to vector<8x1xf32>
    %9 = vector.broadcast %8 : vector<8x1xf32> to vector<8x16xf32>
    %10 = arith.subf %6, %9 : vector<8x16xf32>
    %11 = math.exp %10 : vector<8x16xf32>
    %cst_9 = arith.constant dense<0.000000e+00> : vector<8xf32>
    %12 = vector.multi_reduction <add>, %11, %cst_9 [1] : vector<8x16xf32> to vector<8xf32>
    %13 = vector.shape_cast %12 : vector<8xf32> to vector<8x1xf32>
    %14 = vector.broadcast %13 : vector<8x1xf32> to vector<8x16xf32>
    %15 = arith.divf %11, %14 : vector<8x16xf32>
    %cst_10 = arith.constant dense<0.000000e+00> : vector<8x32xf32>
    %16 = tpu.matmul %15, %3, %cst_10 {dimension_numbers = #tpu.dot_dimension_numbers<[1], [0], [0], [1], [0, 0, 1, 1], [], []>} : vector<8x16xf32>, vector<16x32xf32>, vector<8x32xf32> -> vector<8x32xf32>
    %c0_11 = arith.constant 0 : index
    %c0_12 = arith.constant 0 : index
    %17 = vector.load %arg4[%c0_11, %c0_12] : memref<32x32xf32, #tpu.memory_space<vmem>>, vector<32x32xf32>
    %cst_13 = arith.constant dense<0.000000e+00> : vector<8x32xf32>
    %18 = tpu.matmul %16, %17, %cst_13 {dimension_numbers = #tpu.dot_dimension_numbers<[1], [0], [0], [1], [0, 0, 1, 1], [], []>} : vector<8x32xf32>, vector<32x32xf32>, vector<8x32xf32> -> vector<8x32xf32>
    %c0_14 = arith.constant 0 : index
    %c0_15 = arith.constant 0 : index
    %19 = vector.load %arg5[%c0_14, %c0_15] : memref<32x32xf32, #tpu.memory_space<vmem>>, vector<32x32xf32>
    %cst_16 = arith.constant dense<0.000000e+00> : vector<8x32xf32>
    %20 = tpu.matmul %5, %19, %cst_16 {dimension_numbers = #tpu.dot_dimension_numbers<[1], [0], [0], [1], [0, 0, 1, 1], [], []>} : vector<8x32xf32>, vector<32x32xf32>, vector<8x32xf32> -> vector<8x32xf32>
    %21 = arith.addf %18, %20 : vector<8x32xf32>
    %22 = math.tanh %21 : vector<8x32xf32>
    %c0_17 = arith.constant 0 : index
    %c0_18 = arith.constant 0 : index
    %c0_19 = arith.constant 0 : index
    %23 = vector.load %arg6[%c0_17, %c0_18, %c0_19] : memref<1x8x32xf32, #tpu.memory_space<vmem>>, vector<1x8x32xf32>
    %24 = vector.shape_cast %23 : vector<1x8x32xf32> to vector<8x32xf32>
    %25 = vector.shape_cast %22 : vector<8x32xf32> to vector<1x8x32xf32>
    tpu.vector_store %arg6[%c0_17, %c0_18, %c0_19], %25 {strides = array<i32>} : memref<1x8x32xf32, #tpu.memory_space<vmem>>, vector<1x8x32xf32>,
    %c0_20 = arith.constant 0 : index
    %c0_21 = arith.constant 0 : index
    %c0_22 = arith.constant 0 : index
    %26 = vector.load %arg7[%c0_20, %c0_21, %c0_22] : memref<1x8x16xf32, #tpu.memory_space<vmem>>, vector<1x8x16xf32>
    %27 = vector.shape_cast %26 : vector<1x8x16xf32> to vector<8x16xf32>
    %28 = vector.shape_cast %15 : vector<8x16xf32> to vector<1x8x16xf32>
    tpu.vector_store %arg7[%c0_20, %c0_21, %c0_22], %28 {strides = array<i32>} : memref<1x8x16xf32, #tpu.memory_space<vmem>>, vector<1x8x16xf32>,
    return
  }
  func.func @transform_0(%arg0: i32) -> (i32, i32, i32) {
    %c0_i32 = arith.constant 0 : i32
    %c0_i32_0 = arith.constant 0 : i32
    %c0_i32_1 = arith.constant 0 : i32
    return %arg0, %c0_i32, %c0_i32_0 : i32, i32, i32
  }
  func.func @transform_1(%arg0: i32) -> (i32, i32, i32) {
    %c0_i32 = arith.constant 0 : i32
    %c0_i32_0 = arith.constant 0 : i32
    %c0_i32_1 = arith.constant 0 : i32
    return %arg0, %c0_i32, %c0_i32_0 : i32, i32, i32
  }
  func.func @transform_2(%arg0: i32) -> (i32, i32) {
    %c0_i32 = arith.constant 0 : i32
    %c0_i32_0 = arith.constant 0 : i32
    %c0_i32_1 = arith.constant 0 : i32
    return %c0_i32, %c0_i32_0 : i32, i32
  }
  func.func @transform_3(%arg0: i32) -> (i32, i32) {
    %c0_i32 = arith.constant 0 : i32
    %c0_i32_0 = arith.constant 0 : i32
    %c0_i32_1 = arith.constant 0 : i32
    return %c0_i32, %c0_i32_0 : i32, i32
  }
  func.func @transform_4(%arg0: i32) -> (i32, i32) {
    %c0_i32 = arith.constant 0 : i32
    %c0_i32_0 = arith.constant 0 : i32
    %c0_i32_1 = arith.constant 0 : i32
    return %c0_i32, %c0_i32_0 : i32, i32
  }
  func.func @transform_5(%arg0: i32) -> (i32, i32, i32) {
    %c0_i32 = arith.constant 0 : i32
    %c0_i32_0 = arith.constant 0 : i32
    %c0_i32_1 = arith.constant 0 : i32
    return %arg0, %c0_i32, %c0_i32_0 : i32, i32, i32
  }
  func.func @transform_6(%arg0: i32) -> (i32, i32, i32) {
    %c0_i32 = arith.constant 0 : i32
    %c0_i32_0 = arith.constant 0 : i32
    %c0_i32_1 = arith.constant 0 : i32
    return %arg0, %c0_i32, %c0_i32_0 : i32, i32, i32
  }
}

</mosaic_0001>

<llo_original>
// kernel: tpu_custom_call.1
$region0: #{tpu_custom_call.1}
  #allocation0 [shape = 'u32[]', space=smem, size = 0x4, offset = 0x4, fixed_abs, tag = 'smem constant byte address 0x4 - core index']
  #allocation1 [shape = 'u32[72,128]{1,0:T(1,128)}', space=vmem, size = 0x9000, scoped, tag = 'internal scratch']
  %s0 = inlined_call_operand.hbm [shape: f32[2,8,32], index: 0, kind: input, shape index: {}]
  %s1 = inlined_call_operand.hbm [shape: f32[2,16,32], index: 1, kind: input, shape index: {}]
  %s2 = inlined_call_operand.hbm [shape: f32[32,32], index: 2, kind: input, shape index: {}]
  %s3 = inlined_call_operand.hbm [shape: f32[32,32], index: 3, kind: input, shape index: {}]
  %s4 = inlined_call_operand.hbm [shape: f32[32,32], index: 4, kind: input, shape index: {}]
  %s5 = inlined_call_operand.hbm [shape: f32[2,8,32], index: 5, kind: output, shape index: {0}]
  %s6 = inlined_call_operand.hbm [shape: f32[2,8,16], index: 6, kind: output, shape index: {1}]
  %7 = xla_tuple %s5, %s6
  %s8 = sld [smem:[#allocation0]]
  $region81: #{tpu_custom_call.1} parent=0
    _
  %s10 = ssub.s32 1, %s8
  %s11 = scalar_select 0, %s10, %s8
  $region1: #{tpu_custom_call.1} parent=0
    #allocation2 [shape = 'u8[8192]{0}', space=vmem, size = 0x2000, scoped, tag = 'input window, operand 0']
    #allocation3 [shape = 's32[2]{0}', space=sflag, size = 0x8, scoped, tag = 'scoped memory for tpu_custom_call.1']
    #allocation4 [shape = 's32[2]{0}', space=sflag, size = 0x8, scoped, tag = 'scoped memory for tpu_custom_call.1']
    #allocation5 [shape = 'u8[16384]{0}', space=vmem, size = 0x4000, scoped, tag = 'input window, operand 1']
    #allocation6 [shape = 's32[2]{0}', space=sflag, size = 0x8, scoped, tag = 'scoped memory for tpu_custom_call.1']
    #allocation7 [shape = 'u8[16384]{0}', space=vmem, size = 0x4000, scoped, tag = 'input window, operand 2, single buffered']
    #allocation8 [shape = 'u8[16384]{0}', space=vmem, size = 0x4000, scoped, tag = 'input window, operand 3, single buffered']
    #allocation9 [shape = 's32[1]{0}', space=sflag, size = 0x4, scoped, tag = 'scoped memory for tpu_custom_call.1']
    #allocation10 [shape = 'u8[16384]{0}', space=vmem, size = 0x4000, scoped, tag = 'input window, operand 4, single buffered']
    #allocation11 [shape = 'u8[8192]{0}', space=vmem, size = 0x2000, scoped, tag = 'output window, operand 0']
    #allocation12 [shape = 'u8[8192]{0}', space=vmem, size = 0x2000, scoped, tag = 'output window, operand 1']
    #allocation13 [shape = 's32[2]{0}', space=sflag, size = 0x8, scoped, tag = 'scoped memory for tpu_custom_call.1']
    %12 = vsyncpa [#allocation3], 0
    %s13 = scalar_lea.sflag [#allocation3], 1
    %14 = vsyncpa %s13, 0
    %15 = vsyncpa [#allocation6], 0
    %s16 = scalar_lea.sflag [#allocation6], 1
    %17 = vsyncpa %s16, 0
    %18 = vsyncpa [#allocation9], 0
    %19 = vsyncpa [#allocation4], 0
    %s20 = scalar_lea.sflag [#allocation4], 1
    %21 = vsyncpa %s20, 0
    %22 = vsyncpa [#allocation13], 0
    %s23 = scalar_lea.sflag [#allocation13], 1
    %24 = vsyncpa %s23, 0
    loop: start=0, step=1, limit=4
    $region2: #{tpu_custom_call.1} parent=1 // loop_pre_header
      _
    $region3: #{tpu_custom_call.1} parent=1 // loop_header
      %s26 = sphi 0, %s30
      %p27 = scmp.ge.s32.totalorder %s26, 4
      %s36 = sphi 0, %s38
      %s39 = sphi 0, %s36
      %s40 = sphi 0, %s39
      %s56 = sphi 0, %s40
      %s62 = sphi 0, %s64
      %s65 = sphi 0, %s62
      %s66 = sphi 0, %s65
      %s82 = sphi 0, %s66
      %s86 = sphi 0, %s86
      %s88 = sphi 0, %s86
      %s89 = sphi 0, %s88
      %s103 = sphi 0, %s89
      %s107 = sphi 0, %s107
      %s109 = sphi 0, %s107
      %s110 = sphi 0, %s109
      %s124 = sphi 0, %s110
      %s128 = sphi 0, %s128
      %s130 = sphi 0, %s128
      %s131 = sphi 0, %s130
      %s145 = sphi 0, %s131
      %s151 = sphi 0, %s153
      %s154 = sphi 0, %s151
      %s155 = sphi 0, %s154
      %s171 = sphi 0, %s155
      %s177 = sphi 0, %s179
      %s180 = sphi 0, %s177
      %s181 = sphi 0, %s180
      %s197 = sphi 0, %s181
    $region4: #{tpu_custom_call.1} parent=1 // loop_header_branch
      %29 = sbr.rel (%p27) target = $region8
    $region5: #{tpu_custom_call.1} parent=1 // loop_body
      %s31 = ssub.s32 %s26, 1
      %s32 = ssub.s32 %s26, 2
      %s33 = sadd.s32 %s26, 1
      %s34 = ssub.s32 %s26, %s33
      %p35 = scmp.eq.s32.totalorder %s34, 0
      %s37 = sadd.s32 %s36, 1
      %s38 = scalar_select %p35, %s36, %s37
      %p41 = pneg %p35
      %p42 = scmp.eq.s32.totalorder %s26, 1
      %p43 = por %p41, %p42
      %p44 = scmp.ne.s32.totalorder %s36, %s39
      %p45 = scmp.eq.s32.totalorder %s26, 0
      %p46 = por %p44, %p45
      %p47 = scmp.ne.s32.totalorder %s36, %s39
      %p48 = scmp.eq.s32.totalorder %s31, 1
      %p49 = por %p47, %p48
      %p50 = scmp.ne.s32.totalorder %s39, %s40
      %p51 = scmp.eq.s32.totalorder %s31, 0
      %p52 = por %p50, %p51
      %p53 = scmp.ne.s32.totalorder %s39, %s40
      %p54 = scmp.eq.s32.totalorder %s32, 1
      %p55 = por %p53, %p54
      %p57 = scmp.ne.s32.totalorder %s40, %s56
      %p58 = scmp.eq.s32.totalorder %s32, 0
      %p59 = por %p57, %p58
      %s60 = ssub.s32 %s26, %s33
      %p61 = scmp.eq.s32.totalorder %s60, 0
      %s63 = sadd.s32 %s62, 1
      %s64 = scalar_select %p61, %s62, %s63
      %p67 = pneg %p61
      %p68 = scmp.eq.s32.totalorder %s26, 1
      %p69 = por %p67, %p68
      %p70 = scmp.ne.s32.totalorder %s62, %s65
      %p71 = scmp.eq.s32.totalorder %s26, 0
      %p72 = por %p70, %p71
      %p73 = scmp.ne.s32.totalorder %s62, %s65
      %p74 = scmp.eq.s32.totalorder %s31, 1
      %p75 = por %p73, %p74
      %p76 = scmp.ne.s32.totalorder %s65, %s66
      %p77 = scmp.eq.s32.totalorder %s31, 0
      %p78 = por %p76, %p77
      %p79 = scmp.ne.s32.totalorder %s65, %s66
      %p80 = scmp.eq.s32.totalorder %s32, 1
      %p81 = por %p79, %p80
      %p83 = scmp.ne.s32.totalorder %s66, %s82
      %p84 = scmp.eq.s32.totalorder %s32, 0
      %p85 = por %p83, %p84
      %s87 = sadd.s32 %s86, 1
      %p90 = scmp.eq.s32.totalorder %s26, 1
      %p91 = scmp.ne.s32.totalorder %s86, %s88
      %p92 = scmp.eq.s32.totalorder %s26, 0
      %p93 = por %p91, %p92
      %p94 = scmp.ne.s32.totalorder %s86, %s88
      %p95 = scmp.eq.s32.totalorder %s31, 1
      %p96 = por %p94, %p95
      %p97 = scmp.ne.s32.totalorder %s88, %s89
      %p98 = scmp.eq.s32.totalorder %s31, 0
      %p99 = por %p97, %p98
      %p100 = scmp.ne.s32.totalorder %s88, %s89
      %p101 = scmp.eq.s32.totalorder %s32, 1
      %p102 = por %p100, %p101
      %p104 = scmp.ne.s32.totalorder %s89, %s103
      %p105 = scmp.eq.s32.totalorder %s32, 0
      %p106 = por %p104, %p105
      %s108 = sadd.s32 %s107, 1
      %p111 = scmp.eq.s32.totalorder %s26, 1
      %p112 = scmp.ne.s32.totalorder %s107, %s109
      %p113 = scmp.eq.s32.totalorder %s26, 0
      %p114 = por %p112, %p113
      %p115 = scmp.ne.s32.totalorder %s107, %s109
      %p116 = scmp.eq.s32.totalorder %s31, 1
      %p117 = por %p115, %p116
      %p118 = scmp.ne.s32.totalorder %s109, %s110
      %p119 = scmp.eq.s32.totalorder %s31, 0
      %p120 = por %p118, %p119
      %p121 = scmp.ne.s32.totalorder %s109, %s110
      %p122 = scmp.eq.s32.totalorder %s32, 1
      %p123 = por %p121, %p122
      %p125 = scmp.ne.s32.totalorder %s110, %s124
      %p126 = scmp.eq.s32.totalorder %s32, 0
      %p127 = por %p125, %p126
      %s129 = sadd.s32 %s128, 1
      %p132 = scmp.eq.s32.totalorder %s26, 1
      %p133 = scmp.ne.s32.totalorder %s128, %s130
      %p134 = scmp.eq.s32.totalorder %s26, 0
      %p135 = por %p133, %p134
      %p136 = scmp.ne.s32.totalorder %s128, %s130
      %p137 = scmp.eq.s32.totalorder %s31, 1
      %p138 = por %p136, %p137
      %p139 = scmp.ne.s32.totalorder %s130, %s131
      %p140 = scmp.eq.s32.totalorder %s31, 0
      %p141 = por %p139, %p140
      %p142 = scmp.ne.s32.totalorder %s130, %s131
      %p143 = scmp.eq.s32.totalorder %s32, 1
      %p144 = por %p142, %p143
      %p146 = scmp.ne.s32.totalorder %s131, %s145
      %p147 = scmp.eq.s32.totalorder %s32, 0
      %p148 = por %p146, %p147
      %s149 = ssub.s32 %s26, %s33
      %p150 = scmp.eq.s32.totalorder %s149, 0
      %s152 = sadd.s32 %s151, 1
      %s153 = scalar_select %p150, %s151, %s152
      %p156 = pneg %p150
      %p157 = scmp.eq.s32.totalorder %s26, 1
      %p158 = por %p156, %p157
      %p159 = scmp.ne.s32.totalorder %s151, %s154
      %p160 = scmp.eq.s32.totalorder %s26, 0
      %p161 = por %p159, %p160
      %p162 = scmp.ne.s32.totalorder %s151, %s154
      %p163 = scmp.eq.s32.totalorder %s31, 1
      %p164 = por %p162, %p163
      %p165 = scmp.ne.s32.totalorder %s154, %s155
      %p166 = scmp.eq.s32.totalorder %s31, 0
      %p167 = por %p165, %p166
      %p168 = scmp.ne.s32.totalorder %s154, %s155
      %p169 = scmp.eq.s32.totalorder %s32, 1
      %p170 = por %p168, %p169
      %p172 = scmp.ne.s32.totalorder %s155, %s171
      %p173 = scmp.eq.s32.totalorder %s32, 0
      %p174 = por %p172, %p173
      %s175 = ssub.s32 %s26, %s33
      %p176 = scmp.eq.s32.totalorder %s175, 0
      %s178 = sadd.s32 %s177, 1
      %s179 = scalar_select %p176, %s177, %s178
      %p182 = pneg %p176
      %p183 = scmp.eq.s32.totalorder %s26, 1
      %p184 = por %p182, %p183
      %p185 = scmp.ne.s32.totalorder %s177, %s180
      %p186 = scmp.eq.s32.totalorder %s26, 0
      %p187 = por %p185, %p186
      %p188 = scmp.ne.s32.totalorder %s177, %s180
      %p189 = scmp.eq.s32.totalorder %s31, 1
      %p190 = por %p188, %p189
      %p191 = scmp.ne.s32.totalorder %s180, %s181
      %p192 = scmp.eq.s32.totalorder %s31, 0
      %p193 = por %p191, %p192
      %p194 = scmp.ne.s32.totalorder %s180, %s181
      %p195 = scmp.eq.s32.totalorder %s32, 1
      %p196 = por %p194, %p195
      %p198 = scmp.ne.s32.totalorder %s181, %s197
      %p199 = scmp.eq.s32.totalorder %s32, 0
      %p200 = por %p198, %p199
      %p201 = scmp.le.s32.totalorder 1, %s26
      %p202 = scmp.lt.s32.totalorder %s26, 3
      %p203 = pnand %p201, %p202
      %p204 = pneg %p203
      // Predicated region
      $region9: #{tpu_custom_call.1} parent=5 // pred_check
        _
      $region10: #{tpu_custom_call.1} parent=5 // pred_check_branch
        %206 = sbr.rel (%p203) target = $region12
      $region11: #{tpu_custom_call.1} parent=5 // pred_region
        %s207 = ssub.s32 %s26, 1
        // Predicated region
        $region13: #{tpu_custom_call.1} parent=11 // pred_check
          %p208 = pneg %p99
        $region14: #{tpu_custom_call.1} parent=11 // pred_check_branch
          %210 = sbr.rel (%p208) target = $region16
        $region15: #{tpu_custom_call.1} parent=11 // pred_region
          %212 = vsyncadd [#allocation6], 0
          %s213 = sshll.u32 %s2, 4
          %s214 = int_to_ptr.hbm [resolvable:$true] %s213
          %s215 = sshll.u32 [#allocation7], 4
          %s216 = int_to_ptr.vmem [resolvable:$true] %s215
          %221 = dma.hbm_to_vmem [thread:$0]  %s214, 512, %s216, [#allocation6], 128, 128, 8
        $region16: #{tpu_custom_call.1} parent=11 // pred_fallthru
          _
        // Predicated region
        $region17: #{tpu_custom_call.1} parent=11 // pred_check
          %p222 = pneg %p120
        $region18: #{tpu_custom_call.1} parent=11 // pred_check_branch
          %224 = sbr.rel (%p222) target = $region20
        $region19: #{tpu_custom_call.1} parent=11 // pred_region
          %226 = vsyncadd [#allocation9], 0
          %s227 = sshll.u32 %s3, 4
          %s228 = int_to_ptr.hbm [resolvable:$true] %s227
          %s229 = sshll.u32 [#allocation8], 4
          %s230 = int_to_ptr.vmem [resolvable:$true] %s229
          %235 = dma.hbm_to_vmem [thread:$0]  %s228, 512, %s230, [#allocation9], 128, 128, 8
        $region20: #{tpu_custom_call.1} parent=11 // pred_fallthru
          _
        // Predicated region
        $region21: #{tpu_custom_call.1} parent=11 // pred_check
          %p236 = pneg %p141
        $region22: #{tpu_custom_call.1} parent=11 // pred_check_branch
          %238 = sbr.rel (%p236) target = $region24
        $region23: #{tpu_custom_call.1} parent=11 // pred_region
          %240 = vsyncadd [#allocation9], 0
          %s241 = sshll.u32 %s4, 4
          %s242 = int_to_ptr.hbm [resolvable:$true] %s241
          %s243 = sshll.u32 [#allocation10], 4
          %s244 = int_to_ptr.vmem [resolvable:$true] %s243
          %249 = dma.hbm_to_vmem [thread:$0]  %s242, 512, %s244, [#allocation9], 128, 128, 8
        $region24: #{tpu_custom_call.1} parent=11 // pred_fallthru
          _
      $region12: #{tpu_custom_call.1} parent=5 // pred_fallthru
        _
      %p250 = scmp.lt.s32.totalorder %s26, 2
      // Predicated region
      $region25: #{tpu_custom_call.1} parent=5 // pred_check
        %p251 = pneg %p250
      $region26: #{tpu_custom_call.1} parent=5 // pred_check_branch
        %253 = sbr.rel (%p251) target = $region28
      $region27: #{tpu_custom_call.1} parent=5 // pred_region
        // Predicated region
        $region29: #{tpu_custom_call.1} parent=27 // pred_check
          %p254 = pneg %p46
        $region30: #{tpu_custom_call.1} parent=27 // pred_check_branch
          %256 = sbr.rel (%p254) target = $region32
        $region31: #{tpu_custom_call.1} parent=27 // pred_region
          %s257 = sand.u32 %s36, 1
          %s258 = scalar_lea.sflag [#allocation3], %s257
          %s259 = sand.u32 %s36, 1
          %s260 = smul.addr %s259, 8
          %s261 = scalar_lea.vmem [#allocation2], %s260
          %263 = vsyncadd %s258, 0
          %s264 = smul.addr %s26, 8
          %s265 = scalar_lea.hbm %s0, %s264
          %s267 = sshll.u32 %s265, 4
          %s268 = int_to_ptr.hbm [resolvable:$true] %s267
          %s269 = sshll.u32 %s261, 4
          %s270 = int_to_ptr.vmem [resolvable:$true] %s269
          %272 = dma.hbm_to_vmem [thread:$0]  %s268, 128, %s270, %s258
        $region32: #{tpu_custom_call.1} parent=27 // pred_fallthru
          _
        // Predicated region
        $region33: #{tpu_custom_call.1} parent=27 // pred_check
          %p273 = pneg %p72
        $region34: #{tpu_custom_call.1} parent=27 // pred_check_branch
          %275 = sbr.rel (%p273) target = $region36
        $region35: #{tpu_custom_call.1} parent=27 // pred_region
          %s276 = sand.u32 %s26, 1
          %s277 = scalar_lea.sflag [#allocation6], %s276
          %s278 = sand.u32 %s62, 1
          %s279 = smul.addr %s278, 16
          %s280 = scalar_lea.vmem [#allocation5], %s279
          %282 = vsyncadd %s277, 0
          %s283 = smul.addr %s26, 2
          %s284 = smul.addr %s283, 8
          %s285 = scalar_lea.hbm %s1, %s284
          %s286 = sshll.u32 %s285, 4
          %s287 = int_to_ptr.hbm [resolvable:$true] %s286
          %s288 = sshll.u32 %s280, 4
          %s289 = int_to_ptr.vmem [resolvable:$true] %s288
          %294 = dma.hbm_to_vmem [thread:$0]  %s287, 256, %s289, %s277, 128, 128, 8
        $region36: #{tpu_custom_call.1} parent=27 // pred_fallthru
          _
      $region28: #{tpu_custom_call.1} parent=5 // pred_fallthru
        _
      %p295 = scmp.le.s32.totalorder 1, %s26
      %p296 = scmp.lt.s32.totalorder %s26, 3
      %p297 = pnand %p295, %p296
      %p298 = pneg %p297
      // Predicated region
      $region37: #{tpu_custom_call.1} parent=5 // pred_check
        _
      $region38: #{tpu_custom_call.1} parent=5 // pred_check_branch
        %300 = sbr.rel (%p297) target = $region40
      $region39: #{tpu_custom_call.1} parent=5 // pred_region
        %s301 = ssub.s32 %s26, 1
        %s302 = sand.u32 %s39, 1
        %s303 = scalar_lea.sflag [#allocation3], %s302
        %s304 = sand.u32 %s39, 1
        %s305 = smul.addr %s304, 8
        %s306 = scalar_lea.vmem [#allocation2], %s305
        // Predicated region
        $region41: #{tpu_custom_call.1} parent=39 // pred_check
          %p307 = pneg %p52
        $region42: #{tpu_custom_call.1} parent=39 // pred_check_branch
          %309 = sbr.rel (%p307) target = $region44
        $region43: #{tpu_custom_call.1} parent=39 // pred_region
          %311 = dma.done %s303, 128
        $region44: #{tpu_custom_call.1} parent=39 // pred_fallthru
          _
        %s312 = sand.u32 %s31, 1
        %s313 = scalar_lea.sflag [#allocation6], %s312
        %s314 = sand.u32 %s65, 1
        %s315 = smul.addr %s314, 16
        %s316 = scalar_lea.vmem [#allocation5], %s315
        // Predicated region
        $region45: #{tpu_custom_call.1} parent=39 // pred_check
          %p317 = pneg %p78
        $region46: #{tpu_custom_call.1} parent=39 // pred_check_branch
          %319 = sbr.rel (%p317) target = $region48
        $region47: #{tpu_custom_call.1} parent=39 // pred_region
          %321 = dma.done %s313, 256
        $region48: #{tpu_custom_call.1} parent=39 // pred_fallthru
          _
        // Predicated region
        $region49: #{tpu_custom_call.1} parent=39 // pred_check
          %p322 = pneg %p99
        $region50: #{tpu_custom_call.1} parent=39 // pred_check_branch
          %324 = sbr.rel (%p322) target = $region52
        $region51: #{tpu_custom_call.1} parent=39 // pred_region
          %326 = dma.done [#allocation6], 512
        $region52: #{tpu_custom_call.1} parent=39 // pred_fallthru
          _
        // Predicated region
        $region53: #{tpu_custom_call.1} parent=39 // pred_check
          %p327 = pneg %p120
        $region54: #{tpu_custom_call.1} parent=39 // pred_check_branch
          %329 = sbr.rel (%p327) target = $region56
        $region55: #{tpu_custom_call.1} parent=39 // pred_region
          %331 = dma.done [#allocation9], 512
        $region56: #{tpu_custom_call.1} parent=39 // pred_fallthru
          _
        // Predicated region
        $region57: #{tpu_custom_call.1} parent=39 // pred_check
          %p332 = pneg %p141
        $region58: #{tpu_custom_call.1} parent=39 // pred_check_branch
          %334 = sbr.rel (%p332) target = $region60
        $region59: #{tpu_custom_call.1} parent=39 // pred_region
          %336 = dma.done [#allocation9], 512
        $region60: #{tpu_custom_call.1} parent=39 // pred_fallthru
          _
        %s337 = sand.u32 %s39, 1
        %s338 = scalar_lea.sflag [#allocation3], %s337
        %s339 = sand.u32 %s39, 1
        %s340 = smul.addr %s339, 8
        %s341 = scalar_lea.vmem [#allocation2], %s340
        %p342 = pneg %p52
        %p343 = pneg %p49
        %s344 = sand.u32 %s31, 1
        %s345 = scalar_lea.sflag [#allocation6], %s344
        %s346 = sand.u32 %s65, 1
        %s347 = smul.addr %s346, 16
        %s348 = scalar_lea.vmem [#allocation5], %s347
        %p349 = pneg %p78
        %p350 = pneg %p75
        %p351 = pneg %p99
        %p352 = pneg %p96
        %p353 = pneg %p120
        %p354 = pneg %p117
        %p355 = pneg %p141
        %p356 = pneg %p138
        %p357 = pneg %p167
        %p358 = pneg %p164
        %s359 = sand.u32 %s154, 1
        %s360 = scalar_lea.sflag [#allocation4], %s359
        %s361 = sand.u32 %s154, 1
        %s362 = smul.addr %s361, 8
        %s363 = scalar_lea.vmem [#allocation11], %s362
        %p364 = pneg %p193
        %p365 = pneg %p190
        %s366 = sand.u32 %s180, 1
        %s367 = scalar_lea.sflag [#allocation13], %s366
        %s368 = sand.u32 %s180, 1
        %s369 = smul.addr %s368, 8
        %s370 = scalar_lea.vmem [#allocation12], %s369
        %v371 = vld [vmem:[%s306] sm:$0xff]
        %v372 = vld [vmem:[%s316] sm:$0xff]
        %v373 = vld [vmem:[%s316 + $0x8] sm:$0xff]
        %v374 = vld [vmem:[#allocation7] sm:$0xff]
        %v375 = vld [vmem:[#allocation7 + $0x8] sm:$0xff]
        %v376 = vld [vmem:[#allocation7 + $0x10] sm:$0xff]
        %v377 = vld [vmem:[#allocation7 + $0x18] sm:$0xff]
        %vm378 = vcmask 261120
        %v380 = vsel %vm378, %v371, 0
        %382 = vmatpush.msra.mxu0 0.0
        %383 = vmatpush.msra.mxu0 0.0
        %384 = vmatpush.msra.mxu0 0.0
        %385 = vmatpush.msra.mxu0 0.0
        %386 = vmatpush.msra.mxu0 0.0
        %387 = vmatpush.msra.mxu0 0.0
        %388 = vmatpush.msra.mxu0 0.0
        %389 = vmatpush.msra.mxu0 0.0
        %390 = vmatpush.msra.mxu0 0.0
        %391 = vmatpush.msra.mxu0 0.0
        %392 = vmatpush.msra.mxu0 0.0
        %393 = vmatpush.msra.mxu0 0.0
        %394 = vmatpush.msra.mxu0 %v377
        %395 = vmatpush.msra.mxu0 %v376
        %396 = vmatpush.msra.mxu0 %v375
        %397 = vmatpush.msra.mxu0 %v374
        %398 = vmatmul.f32.gmra.mxu0 %v380
        %v399 = vpop.f32.mrf.mxu0
        %v400 = vadd.f32 0.0, %v399
        %401 = vdwg.mxu0
        %v403 = vsel %vm378, %v400, 0
        %v406 = vsel %vm378, %v372, 0
        %v409 = vsel %vm378, %v373, 0
        %411 = vmatpush.xpose.msra.mxu0 0.0
        %412 = vmatpush.xpose.msra.mxu0 0.0
        %413 = vmatpush.xpose.msra.mxu0 0.0
        %414 = vmatpush.xpose.msra.mxu0 0.0
        %415 = vmatpush.xpose.msra.mxu0 0.0
        %416 = vmatpush.xpose.msra.mxu0 0.0
        %417 = vmatpush.xpose.msra.mxu0 0.0
        %418 = vmatpush.xpose.msra.mxu0 0.0
        %419 = vmatpush.xpose.msra.mxu0 0.0
        %420 = vmatpush.xpose.msra.mxu0 0.0
        %421 = vmatpush.xpose.msra.mxu0 0.0
        %422 = vmatpush.xpose.msra.mxu0 0.0
        %423 = vmatpush.xpose.msra.mxu0 0.0
        %424 = vmatpush.xpose.msra.mxu0 0.0
        %425 = vmatpush.xpose.msra.mxu0 %v409
        %426 = vmatpush.xpose.msra.mxu0 %v406
        %427 = vmatmul.f32.gmra.mxu0 %v403
        %v428 = vpop.f32.mrf.mxu0
        %v429 = vadd.f32 0.0, %v428
        %430 = vdwg.mxu0
        %vm431 = vcmask 130048
        %v432 = vsel %vm431, %v429, -inf
        %433 = vmax.xlane.f32.xlu0 %v432
        %v434 = vpop.xlane.xlu0 %433
        %v435 = vsub.f32 %v429, %v434
        %v436 = vmul.f32 %v435, 1.442695
        %v437 = vpow.pop %v436
        %v438 = vsel %vm431, %v437, 0.0
        %439 = vadd.xlane.f32.xlu0 %v438
        %v440 = vpop.xlane.xlu0 %439
        %v441 = vrcp.pop %v440
        %v442 = vmul.f32 %v440, %v441
        %v443 = vsub.f32 1.0, %v442
        %v444 = vmul.f32 %v441, %v443
        %v445 = vadd.f32 %v441, %v444
        %vm446 = vweird.f32 %v440
        %vm447 = vweird.f32 %v441
        %vm448 = vmor %vm446, %vm447
        %v449 = vsel %vm448, %v441, %v445
        %v450 = vand.u32 2147483647, %v440
        %vm451 = vcmp.eq.f32.partialorder %v450, 8.507059e+37
        %v452 = vand.u32 %v440, 2147483648
        %v453 = vor.u32 1.1754944e-38, %v452
        %v454 = vsel %vm451, %v453, %v449
        %v455 = vmul.f32 %v437, %v454
        %v457 = vsel %vm431, %v455, 0
        %459 = vmatpush.msra.mxu0 0.0
        %460 = vmatpush.msra.mxu0 0.0
        %461 = vmatpush.msra.mxu0 0.0
        %462 = vmatpush.msra.mxu0 0.0
        %463 = vmatpush.msra.mxu0 0.0
        %464 = vmatpush.msra.mxu0 0.0
        %465 = vmatpush.msra.mxu0 0.0
        %466 = vmatpush.msra.mxu0 0.0
        %467 = vmatpush.msra.mxu0 0.0
        %468 = vmatpush.msra.mxu0 0.0
        %469 = vmatpush.msra.mxu0 0.0
        %470 = vmatpush.msra.mxu0 0.0
        %471 = vmatpush.msra.mxu0 0.0
        %472 = vmatpush.msra.mxu0 0.0
        %473 = vmatpush.msra.mxu0 %v373
        %474 = vmatpush.msra.mxu0 %v372
        %475 = vmatmul.f32.gmra.mxu0 %v457
        %v476 = vpop.f32.mrf.mxu0
        %v477 = vadd.f32 0.0, %v476
        %478 = vdwg.mxu0
        %v479 = vld [vmem:[#allocation8] sm:$0xff]
        %v480 = vld [vmem:[#allocation8 + $0x8] sm:$0xff]
        %v481 = vld [vmem:[#allocation8 + $0x10] sm:$0xff]
        %v482 = vld [vmem:[#allocation8 + $0x18] sm:$0xff]
        %v483 = vld [vmem:[#allocation10] sm:$0xff]
        %v484 = vld [vmem:[#allocation10 + $0x8] sm:$0xff]
        %v485 = vld [vmem:[#allocation10 + $0x10] sm:$0xff]
        %v486 = vld [vmem:[#allocation10 + $0x18] sm:$0xff]
        %487 = vmatpush.msra.mxu0 0.0
        %488 = vmatpush.msra.mxu0 0.0
        %489 = vmatpush.msra.mxu0 0.0
        %490 = vmatpush.msra.mxu0 0.0
        %491 = vmatpush.msra.mxu0 0.0
        %492 = vmatpush.msra.mxu0 0.0
        %493 = vmatpush.msra.mxu0 0.0
        %494 = vmatpush.msra.mxu0 0.0
        %495 = vmatpush.msra.mxu0 0.0
        %496 = vmatpush.msra.mxu0 0.0
        %497 = vmatpush.msra.mxu0 0.0
        %498 = vmatpush.msra.mxu0 0.0
        %499 = vmatpush.msra.mxu0 %v486
        %500 = vmatpush.msra.mxu0 %v485
        %501 = vmatpush.msra.mxu0 %v484
        %502 = vmatpush.msra.mxu0 %v483
        %503 = vmatmul.f32.gmra.mxu0 %v403
        %v504 = vpop.f32.mrf.mxu0
        %v505 = vadd.f32 0.0, %v504
        %506 = vdwg.mxu0
        %v508 = vsel %vm378, %v477, 0
        %510 = vmatpush.msra.mxu0 0.0
        %511 = vmatpush.msra.mxu0 0.0
        %512 = vmatpush.msra.mxu0 0.0
        %513 = vmatpush.msra.mxu0 0.0
        %514 = vmatpush.msra.mxu0 0.0
        %515 = vmatpush.msra.mxu0 0.0
        %516 = vmatpush.msra.mxu0 0.0
        %517 = vmatpush.msra.mxu0 0.0
        %518 = vmatpush.msra.mxu0 0.0
        %519 = vmatpush.msra.mxu0 0.0
        %520 = vmatpush.msra.mxu0 0.0
        %521 = vmatpush.msra.mxu0 0.0
        %522 = vmatpush.msra.mxu0 %v482
        %523 = vmatpush.msra.mxu0 %v481
        %524 = vmatpush.msra.mxu0 %v480
        %525 = vmatpush.msra.mxu0 %v479
        %526 = vmatmul.f32.gmra.mxu0 %v508
        %v527 = vpop.f32.mrf.mxu0
        %v528 = vadd.f32 %v505, %v527
        %529 = vdwg.mxu0
        %v530 = vtanh.pop %v528
        %531 = vst.msk [vmem:[%s363] sm:$0xff] %vm378, %v530
        %532 = vst.msk [vmem:[%s370] sm:$0xff] %vm431, %v455
        %s533 = sand.u32 %s154, 1
        %s534 = scalar_lea.sflag [#allocation4], %s533
        %s535 = sand.u32 %s154, 1
        %s536 = smul.addr %s535, 8
        %s537 = scalar_lea.vmem [#allocation11], %s536
        %s538 = sand.u32 %s180, 1
        %s539 = scalar_lea.sflag [#allocation13], %s538
        %s540 = sand.u32 %s180, 1
        %s541 = smul.addr %s540, 8
        %s542 = scalar_lea.vmem [#allocation12], %s541
        // Predicated region
        $region61: #{tpu_custom_call.1} parent=39 // pred_check
          %p543 = pneg %p164
        $region62: #{tpu_custom_call.1} parent=39 // pred_check_branch
          %545 = sbr.rel (%p543) target = $region64
        $region63: #{tpu_custom_call.1} parent=39 // pred_region
          %547 = vsyncadd %s534, 0
          %s548 = smul.addr %s31, 8
          %s549 = scalar_lea.hbm %s5, %s548
          %s551 = sshll.u32 %s537, 4
          %s552 = int_to_ptr.vmem [resolvable:$true] %s551
          %s553 = sshll.u32 %s549, 4
          %s554 = int_to_ptr.hbm [resolvable:$true] %s553
          %556 = dma.vmem_to_hbm [thread:$0]  %s552, 128, %s554, %s534
        $region64: #{tpu_custom_call.1} parent=39 // pred_fallthru
          _
        // Predicated region
        $region65: #{tpu_custom_call.1} parent=39 // pred_check
          %p557 = pneg %p190
        $region66: #{tpu_custom_call.1} parent=39 // pred_check_branch
          %559 = sbr.rel (%p557) target = $region68
        $region67: #{tpu_custom_call.1} parent=39 // pred_region
          %561 = vsyncadd %s539, 0
          %s562 = smul.addr %s31, 8
          %s563 = scalar_lea.hbm %s6, %s562
          %s565 = sshll.u32 %s542, 4
          %s566 = int_to_ptr.vmem [resolvable:$true] %s565
          %s567 = sshll.u32 %s563, 4
          %s568 = int_to_ptr.hbm [resolvable:$true] %s567
          %570 = dma.vmem_to_hbm [thread:$0]  %s566, 128, %s568, %s539
        $region68: #{tpu_custom_call.1} parent=39 // pred_fallthru
          _
      $region40: #{tpu_custom_call.1} parent=5 // pred_fallthru
        _
      %p571 = scmp.le.s32.totalorder 2, %s26
      // Predicated region
      $region69: #{tpu_custom_call.1} parent=5 // pred_check
        %p572 = pneg %p571
      $region70: #{tpu_custom_call.1} parent=5 // pred_check_branch
        %574 = sbr.rel (%p572) target = $region72
      $region71: #{tpu_custom_call.1} parent=5 // pred_region
        %s575 = ssub.s32 %s26, 2
        // Predicated region
        $region73: #{tpu_custom_call.1} parent=71 // pred_check
          %p576 = pneg %p170
        $region74: #{tpu_custom_call.1} parent=71 // pred_check_branch
          %578 = sbr.rel (%p576) target = $region76
        $region75: #{tpu_custom_call.1} parent=71 // pred_region
          %s579 = sand.u32 %s155, 1
          %s580 = scalar_lea.sflag [#allocation4], %s579
          %s581 = sand.u32 %s155, 1
          %s582 = smul.addr %s581, 8
          %s583 = scalar_lea.vmem [#allocation11], %s582
          %585 = dma.done %s580, 128
        $region76: #{tpu_custom_call.1} parent=71 // pred_fallthru
          _
        // Predicated region
        $region77: #{tpu_custom_call.1} parent=71 // pred_check
          %p586 = pneg %p196
        $region78: #{tpu_custom_call.1} parent=71 // pred_check_branch
          %588 = sbr.rel (%p586) target = $region80
        $region79: #{tpu_custom_call.1} parent=71 // pred_region
          %s589 = sand.u32 %s181, 1
          %s590 = scalar_lea.sflag [#allocation13], %s589
          %s591 = sand.u32 %s181, 1
          %s592 = smul.addr %s591, 8
          %s593 = scalar_lea.vmem [#allocation12], %s592
          %595 = dma.done %s590, 128
        $region80: #{tpu_custom_call.1} parent=71 // pred_fallthru
          _
      $region72: #{tpu_custom_call.1} parent=5 // pred_fallthru
        _
    $region6: #{tpu_custom_call.1} parent=1 // loop_footer
      %s30 = sadd.s32 1, %s26
    $region7: #{tpu_custom_call.1} parent=1 // loop_footer_branch
      %25 = sbr.rel target = $region3
    $region8: #{tpu_custom_call.1} parent=1 // loop_exit
      _
    %596 = vsyncpa [#allocation3], 1
    %s597 = scalar_lea.sflag [#allocation3], 1
    %598 = vsyncpa %s597, 1
    %599 = vsyncpa [#allocation6], 1
    %s600 = scalar_lea.sflag [#allocation6], 1
    %601 = vsyncpa %s600, 1
    %602 = vsyncpa [#allocation9], 1
    %603 = vsyncpa [#allocation4], 1
    %s604 = scalar_lea.sflag [#allocation4], 1
    %605 = vsyncpa %s604, 1
    %606 = vsyncpa [#allocation13], 1
    %s607 = scalar_lea.sflag [#allocation13], 1
    %608 = vsyncpa %s607, 1

</llo_original>
